<compile_context>
chip_gen: v5e
topology: v5e:2x2
jax: 0.10.0
libtpu: 0.0.40
codegen_flags: <defaults>
</compile_context>

<pallas_src>
import math

import jax
import jax.numpy as jnp
from jax.experimental import pallas as pl
from jax.experimental.pallas import tpu as pltpu

STATE_SIZE = 3
HIDDEN = 24
ACTION_SIZE = 5

LANE = 128        # lane width: hidden / output feature dims padded to this
IN_PAD = 8        # input features (3) padded to one f32 sublane group
SUBLANE = 8       # f32 sublane count; batch tiles are multiples of this
P1_ROWS = 8       # layer-1 slab rows: 0..2 = W1, 5/6/7 = b1/b2/b3
B1_ROW, B2_ROW, B3_ROW = 5, 6, 7


def _round_up(n, m):
    return ((n + m - 1) // m) * m


def dqn_kernel(x_ref, p1_ref, p23_ref, o_ref):
    # x_ref  : [TB, 8]        state tile (cols 0..2 real, cols 3..7 zero)
    # p1_ref : [8, 128]       W1 rows 0..2 (zero-padded) + bias rows 5/6/7
    # p23_ref: [2, 128, 128]  W2 / W3, zero-padded
    # o_ref  : [TB, 128]      Q-values in cols 0..4, zeros elsewhere
    x = x_ref[...]
    p1 = p1_ref[...]
    b1 = p1[B1_ROW:B1_ROW + 1, :]
    b2 = p1[B2_ROW:B2_ROW + 1, :]
    b3 = p1[B3_ROW:B3_ROW + 1, :]

    # Layer 1 on the MXU.  x cols 3..7 are exact zeros, so the bias rows
    # stashed in rows 5..7 of p1 contribute nothing to the contraction.
    h1 = jnp.dot(x, p1, preferred_element_type=jnp.float32)
    h1 = jnp.maximum(h1 + b1, 0.0)                       # [TB, 128]

    # Layers 2 / 3: 128x128 MXU matmuls; padded rows/cols are exact zeros.
    h2 = jnp.dot(h1, p23_ref[0], preferred_element_type=jnp.float32) + b2
    h2 = jnp.maximum(h2, 0.0)
    out = jnp.dot(h2, p23_ref[1], preferred_element_type=jnp.float32) + b3

    o_ref[...] = out.astype(o_ref.dtype)


def pack_params(params):
    """Pack (w1,b1,w2,b2,w3,b3) into ([8,128], [2,128,128]) f32 slabs."""
    w1, b1, w2, b2, w3, b3 = params
    p1 = jnp.zeros((P1_ROWS, LANE), jnp.float32)
    p1 = p1.at[:STATE_SIZE, :HIDDEN].set(w1)
    p1 = p1.at[B1_ROW, :HIDDEN].set(b1)
    p1 = p1.at[B2_ROW, :HIDDEN].set(b2)
    p1 = p1.at[B3_ROW, :ACTION_SIZE].set(b3)

    p23 = jnp.zeros((2, LANE, LANE), jnp.float32)
    p23 = p23.at[0, :HIDDEN, :HIDDEN].set(w2)
    p23 = p23.at[1, :HIDDEN, :ACTION_SIZE].set(w3)
    return p1, p23


def dqn_forward(x, packed_params, tb=1024):
    """x: [B, 3] float32 -> [B, 5] Q-values."""
    p1, p23 = packed_params
    B = x.shape[0]

    # Batch tile: multiple of 8 sublanes, no bigger than needed.
    tb = _round_up(min(tb, max(B, 1)), SUBLANE)
    B_pad = _round_up(B, tb)
    grid = (B_pad // tb,)

    # Narrow (8-lane) padded input; pads are exact zeros.
    x_pad = jnp.zeros((B_pad, IN_PAD), jnp.float32).at[:B, :STATE_SIZE].set(
        x.astype(jnp.float32))

    flops = 2 * B_pad * (IN_PAD * LANE + 2 * LANE * LANE)
    bytes_accessed = 4 * (B_pad * IN_PAD + p1.size + p23.size + B_pad * LANE)

    # Double-buffered in/out tiles + one (replicated) copy of the params,
    # plus headroom for Mosaic internal scratch.
    param_bytes = 4 * (p1.size + p23.size)
    tile_bytes = 4 * tb * (IN_PAD + LANE)
    vmem_limit = int(2 * (param_bytes + tile_bytes) + (4 << 20))

    out_pad = pl.pallas_call(
        dqn_kernel,
        out_shape=jax.ShapeDtypeStruct((B_pad, LANE), jnp.float32),
        grid=grid,
        in_specs=[
            pl.BlockSpec((tb, IN_PAD), lambda i: (i, 0)),          # x tile
            pl.BlockSpec((P1_ROWS, LANE), lambda i: (0, 0)),       # p1 (replicated)
            pl.BlockSpec((2, LANE, LANE), lambda i: (0, 0, 0)),    # p23 (replicated)
        ],
        out_specs=pl.BlockSpec((tb, LANE), lambda i: (i, 0)),
        compiler_params=pltpu.CompilerParams(
            dimension_semantics=("parallel",),
            vmem_limit_bytes=vmem_limit),
        cost_estimate=pl.CostEstimate(
            flops=flops, transcendentals=0, bytes_accessed=bytes_accessed),
    )(x_pad, p1, p23)

    # Real batch rows / action columns (lane-dense store inside the kernel,
    # cheap slice outside).
    return out_pad[:B, :ACTION_SIZE]


def init_params(key):
    # torch.nn.Linear default init: U(-1/sqrt(fan_in), 1/sqrt(fan_in)).
    def linear(key, fan_in, fan_out):
        kw, kb = jax.random.split(key)
        bound = 1.0 / math.sqrt(fan_in)
        w = jax.random.uniform(kw, (fan_in, fan_out), jnp.float32, -bound, bound)
        b = jax.random.uniform(kb, (fan_out,), jnp.float32, -bound, bound)
        return w, b

    k1, k2, k3 = jax.random.split(key, 3)
    w1, b1 = linear(k1, STATE_SIZE, HIDDEN)
    w2, b2 = linear(k2, HIDDEN, HIDDEN)
    w3, b3 = linear(k3, HIDDEN, ACTION_SIZE)
    return (w1, b1, w2, b2, w3, b3)


def dqn_reference(x, params):
    w1, b1, w2, b2, w3, b3 = params
    h1 = jnp.maximum(x @ w1 + b1, 0.0)
    h2 = jnp.maximum(h1 @ w2 + b2, 0.0)
    return h2 @ w3 + b3


if __name__ == "__main__":
    key = jax.random.PRNGKey(0)
    k_params, k_x1, k_x2 = jax.random.split(key, 3)

    params = init_params(k_params)
    packed = pack_params(params)

    # Small latency-path batch (single grid step).
    x_small = jax.random.normal(k_x1, (4, STATE_SIZE), jnp.float32)
    out_small = dqn_forward(x_small, packed)
    jax.block_until_ready(out_small)
    ref_small = dqn_reference(x_small, params)
    assert out_small.shape == (4, ACTION_SIZE)
    assert jnp.allclose(out_small, ref_small, atol=1e-5, rtol=1e-5)

    # Multi-tile path: exercise the batch grid (5 grid steps of 8 rows).
    x_big = jax.random.normal(k_x2, (40, STATE_SIZE), jnp.float32)
    out_big = dqn_forward(x_big, packed, tb=8)
    jax.block_until_ready(out_big)
    ref_big = dqn_reference(x_big, params)
    assert out_big.shape == (40, ACTION_SIZE)
    assert jnp.allclose(out_big, ref_big, atol=1e-5, rtol=1e-5)

    print("KERNEL_OK")
</pallas_src>

<mosaic_0001>
module attributes {stable_mosaic.version = 11 : i64} {
  func.func @dqn_kernel(%arg0: i32, %arg1: memref<8x8xf32, #tpu.memory_space<vmem>>, %arg2: memref<8x128xf32, #tpu.memory_space<vmem>>, %arg3: memref<2x128x128xf32, #tpu.memory_space<vmem>>, %arg4: memref<8x128xf32, #tpu.memory_space<vmem>>) attributes {dimension_semantics = [#tpu.dimension_semantics<parallel>], iteration_bounds = array<i64: 1>, scalar_prefetch = 0 : i64, scratch_operands = 0 : i64, tpu.core_type = #tpu.core_type<tc>, window_params = [{transform_indices = @transform_0, window_bounds = array<i64: 8, 8>}, {pipeline_mode = #tpu.pipeline_mode<synchronous>, transform_indices = @transform_1, window_bounds = array<i64: 8, 128>}, {pipeline_mode = #tpu.pipeline_mode<synchronous>, transform_indices = @transform_2, window_bounds = array<i64: 2, 128, 128>}, {transform_indices = @transform_3, window_bounds = array<i64: 8, 128>}]} {
    %c0 = arith.constant 0 : index
    %c0_0 = arith.constant 0 : index
    %0 = vector.load %arg1[%c0, %c0_0] : memref<8x8xf32, #tpu.memory_space<vmem>>, vector<8x8xf32>
    %c0_1 = arith.constant 0 : index
    %c0_2 = arith.constant 0 : index
    %1 = vector.load %arg2[%c0_1, %c0_2] : memref<8x128xf32, #tpu.memory_space<vmem>>, vector<8x128xf32>
    %2 = vector.extract_strided_slice %1 {offsets = [5, 0], sizes = [1, 128], strides = [1, 1]} : vector<8x128xf32> to vector<1x128xf32>
    %3 = vector.extract_strided_slice %1 {offsets = [6, 0], sizes = [1, 128], strides = [1, 1]} : vector<8x128xf32> to vector<1x128xf32>
    %4 = vector.extract_strided_slice %1 {offsets = [7, 0], sizes = [1, 128], strides = [1, 1]} : vector<8x128xf32> to vector<1x128xf32>
    %cst = arith.constant dense<0.000000e+00> : vector<8x128xf32>
    %5 = tpu.matmul %0, %1, %cst {dimension_numbers = #tpu.dot_dimension_numbers<[1], [0], [0], [1], [0, 0, 1, 1], [], []>} : vector<8x8xf32>, vector<8x128xf32>, vector<8x128xf32> -> vector<8x128xf32>
    %6 = vector.broadcast %2 : vector<1x128xf32> to vector<8x128xf32>
    %7 = arith.addf %5, %6 : vector<8x128xf32>
    %cst_3 = arith.constant 0.000000e+00 : f32
    %8 = vector.broadcast %cst_3 : f32 to vector<8x128xf32>
    %9 = arith.maximumf %7, %8 : vector<8x128xf32>
    %c0_4 = arith.constant 0 : index
    %c0_5 = arith.constant 0 : index
    %c0_6 = arith.constant 0 : index
    %10 = vector.load %arg3[%c0_4, %c0_5, %c0_6] : memref<2x128x128xf32, #tpu.memory_space<vmem>>, vector<1x128x128xf32>
    %11 = vector.shape_cast %10 : vector<1x128x128xf32> to vector<128x128xf32>
    %cst_7 = arith.constant dense<0.000000e+00> : vector<8x128xf32>
    %12 = tpu.matmul %9, %11, %cst_7 {dimension_numbers = #tpu.dot_dimension_numbers<[1], [0], [0], [1], [0, 0, 1, 1], [], []>} : vector<8x128xf32>, vector<128x128xf32>, vector<8x128xf32> -> vector<8x128xf32>
    %13 = vector.broadcast %3 : vector<1x128xf32> to vector<8x128xf32>
    %14 = arith.addf %12, %13 : vector<8x128xf32>
    %cst_8 = arith.constant 0.000000e+00 : f32
    %15 = vector.broadcast %cst_8 : f32 to vector<8x128xf32>
    %16 = arith.maximumf %14, %15 : vector<8x128xf32>
    %c1 = arith.constant 1 : index
    %c0_9 = arith.constant 0 : index
    %c0_10 = arith.constant 0 : index
    %17 = vector.load %arg3[%c1, %c0_9, %c0_10] : memref<2x128x128xf32, #tpu.memory_space<vmem>>, vector<1x128x128xf32>
    %18 = vector.shape_cast %17 : vector<1x128x128xf32> to vector<128x128xf32>
    %cst_11 = arith.constant dense<0.000000e+00> : vector<8x128xf32>
    %19 = tpu.matmul %16, %18, %cst_11 {dimension_numbers = #tpu.dot_dimension_numbers<[1], [0], [0], [1], [0, 0, 1, 1], [], []>} : vector<8x128xf32>, vector<128x128xf32>, vector<8x128xf32> -> vector<8x128xf32>
    %20 = vector.broadcast %4 : vector<1x128xf32> to vector<8x128xf32>
    %21 = arith.addf %19, %20 : vector<8x128xf32>
    %c0_12 = arith.constant 0 : index
    %c0_13 = arith.constant 0 : index
    %22 = vector.load %arg4[%c0_12, %c0_13] : memref<8x128xf32, #tpu.memory_space<vmem>>, vector<8x128xf32>
    tpu.vector_store %arg4[%c0_12, %c0_13], %21 {strides = array<i32>} : memref<8x128xf32, #tpu.memory_space<vmem>>, vector<8x128xf32>,
    return
  }
  func.func @transform_0(%arg0: i32) -> (i32, i32) {
    %c0_i32 = arith.constant 0 : i32
    %c0_i32_0 = arith.constant 0 : i32
    return %arg0, %c0_i32 : i32, i32
  }
  func.func @transform_1(%arg0: i32) -> (i32, i32) {
    %c0_i32 = arith.constant 0 : i32
    %c0_i32_0 = arith.constant 0 : i32
    %c0_i32_1 = arith.constant 0 : i32
    return %c0_i32, %c0_i32_0 : i32, i32
  }
  func.func @transform_2(%arg0: i32) -> (i32, i32, i32) {
    %c0_i32 = arith.constant 0 : i32
    %c0_i32_0 = arith.constant 0 : i32
    %c0_i32_1 = arith.constant 0 : i32
    %c0_i32_2 = arith.constant 0 : i32
    return %c0_i32, %c0_i32_0, %c0_i32_1 : i32, i32, i32
  }
  func.func @transform_3(%arg0: i32) -> (i32, i32) {
    %c0_i32 = arith.constant 0 : i32
    %c0_i32_0 = arith.constant 0 : i32
    return %arg0, %c0_i32 : i32, i32
  }
}

</mosaic_0001>

<llo_original>
// kernel: tpu_custom_call.1
$region0: #{tpu_custom_call.1}
  #allocation0 [shape = 'u32[]', space=smem, size = 0x4, offset = 0x4, fixed_abs, tag = 'smem constant byte address 0x4 - core index']
  #allocation1 [shape = 'u32[72,128]{1,0:T(1,128)}', space=vmem, size = 0x9000, scoped, tag = 'internal scratch']
  %s0 = inlined_call_operand.hbm [shape: f32[8,8], index: 0, kind: input, shape index: {}]
  %s1 = inlined_call_operand.hbm [shape: f32[8,128], index: 1, kind: input, shape index: {}]
  %s2 = inlined_call_operand.hbm [shape: f32[2,128,128], index: 2, kind: input, shape index: {}]
  %s3 = inlined_call_operand.hbm [shape: f32[8,128], index: 3, kind: output, shape index: {}]
  %s4 = sld [smem:[#allocation0]]
  $region34: #{tpu_custom_call.1} parent=0
    _
  %s6 = ssub.s32 1, %s4
  %s7 = scalar_select 0, %s6, %s4
  $region1: #{tpu_custom_call.1} parent=0
    #allocation2 [shape = 'u8[4096]{0}', space=vmem, size = 0x1000, scoped, tag = 'input window, operand 0, single buffered']
    #allocation3 [shape = 's32[1]{0}', space=sflag, size = 0x4, scoped, tag = 'scoped memory for tpu_custom_call.1']
    #allocation4 [shape = 's32[1]{0}', space=sflag, size = 0x4, scoped, tag = 'scoped memory for tpu_custom_call.1']
    #allocation5 [shape = 'u8[4096]{0}', space=vmem, size = 0x1000, scoped, tag = 'input window, operand 1, single buffered']
    #allocation6 [shape = 's32[1]{0}', space=sflag, size = 0x4, scoped, tag = 'scoped memory for tpu_custom_call.1']
    #allocation7 [shape = 'u8[131072]{0}', space=vmem, size = 0x20000, scoped, tag = 'input window, operand 2, single buffered']
    #allocation8 [shape = 'u8[4096]{0}', space=vmem, size = 0x1000, scoped, tag = 'output window, operand 0, single buffered']
    %8 = vsyncpa [#allocation3], 0
    %9 = vsyncpa [#allocation6], 0
    %10 = vsyncpa [#allocation4], 0
    // Predicated region
    $region2: #{tpu_custom_call.1} parent=1 // pred_check
      _
    $region3: #{tpu_custom_call.1} parent=1 // pred_check_branch
      %12 = sbr.rel (0) target = $region5
    $region4: #{tpu_custom_call.1} parent=1 // pred_region
      %14 = vsyncadd [#allocation3], 0
      %s16 = sshll.u32 %s0, 4
      %s17 = int_to_ptr.hbm [resolvable:$true] %s16
      %s18 = sshll.u32 [#allocation2], 4
      %s19 = int_to_ptr.vmem [resolvable:$true] %s18
      %21 = dma.hbm_to_vmem [thread:$0]  %s17, 128, %s19, [#allocation3]
    $region5: #{tpu_custom_call.1} parent=1 // pred_fallthru
      _
    // Predicated region
    $region6: #{tpu_custom_call.1} parent=1 // pred_check
      _
    $region7: #{tpu_custom_call.1} parent=1 // pred_check_branch
      %23 = sbr.rel (0) target = $region9
    $region8: #{tpu_custom_call.1} parent=1 // pred_region
      %25 = vsyncadd [#allocation6], 0
      %s27 = sshll.u32 %s1, 4
      %s28 = int_to_ptr.hbm [resolvable:$true] %s27
      %s29 = sshll.u32 [#allocation5], 4
      %s30 = int_to_ptr.vmem [resolvable:$true] %s29
      %32 = dma.hbm_to_vmem [thread:$0]  %s28, 128, %s30, [#allocation6]
    $region9: #{tpu_custom_call.1} parent=1 // pred_fallthru
      _
    // Predicated region
    $region10: #{tpu_custom_call.1} parent=1 // pred_check
      _
    $region11: #{tpu_custom_call.1} parent=1 // pred_check_branch
      %34 = sbr.rel (0) target = $region13
    $region12: #{tpu_custom_call.1} parent=1 // pred_region
      %36 = vsyncadd [#allocation6], 0
      %s37 = sshll.u32 %s2, 4
      %s38 = int_to_ptr.hbm [resolvable:$true] %s37
      %s39 = sshll.u32 [#allocation7], 4
      %s40 = int_to_ptr.vmem [resolvable:$true] %s39
      %45 = dma.hbm_to_vmem [thread:$0]  %s38, 4096, %s40, [#allocation6], 128, 128, 8
    $region13: #{tpu_custom_call.1} parent=1 // pred_fallthru
      _
    // Predicated region
    $region14: #{tpu_custom_call.1} parent=1 // pred_check
      _
    $region15: #{tpu_custom_call.1} parent=1 // pred_check_branch
      %47 = sbr.rel (0) target = $region17
    $region16: #{tpu_custom_call.1} parent=1 // pred_region
      %49 = dma.done [#allocation3], 128
    $region17: #{tpu_custom_call.1} parent=1 // pred_fallthru
      _
    // Predicated region
    $region18: #{tpu_custom_call.1} parent=1 // pred_check
      _
    $region19: #{tpu_custom_call.1} parent=1 // pred_check_branch
      %51 = sbr.rel (0) target = $region21
    $region20: #{tpu_custom_call.1} parent=1 // pred_region
      %53 = dma.done [#allocation6], 128
    $region21: #{tpu_custom_call.1} parent=1 // pred_fallthru
      _
    // Predicated region
    $region22: #{tpu_custom_call.1} parent=1 // pred_check
      _
    $region23: #{tpu_custom_call.1} parent=1 // pred_check_branch
      %55 = sbr.rel (0) target = $region25
    $region24: #{tpu_custom_call.1} parent=1 // pred_region
      %57 = dma.done [#allocation6], 4096
    $region25: #{tpu_custom_call.1} parent=1 // pred_fallthru
      _
    %v58 = vld [vmem:[#allocation2] sm:$0xff]
    %v59 = vld [vmem:[#allocation5] sm:$0xff]
    %v60 = vperm.slane %v59, 5
    %vm61 = vcmask 64512
    %v63 = vsel %vm61, %v58, 0
    %65 = vmatpush.msra.mxu0 0.0
    %66 = vmatpush.msra.mxu0 0.0
    %67 = vmatpush.msra.mxu0 0.0
    %68 = vmatpush.msra.mxu0 0.0
    %69 = vmatpush.msra.mxu0 0.0
    %70 = vmatpush.msra.mxu0 0.0
    %71 = vmatpush.msra.mxu0 0.0
    %72 = vmatpush.msra.mxu0 0.0
    %73 = vmatpush.msra.mxu0 0.0
    %74 = vmatpush.msra.mxu0 0.0
    %75 = vmatpush.msra.mxu0 0.0
    %76 = vmatpush.msra.mxu0 0.0
    %77 = vmatpush.msra.mxu0 0.0
    %78 = vmatpush.msra.mxu0 0.0
    %79 = vmatpush.msra.mxu0 0.0
    %80 = vmatpush.msra.mxu0 %v59
    %81 = vmatmul.f32.gmra.mxu0 %v63
    %v82 = vpop.f32.mrf.mxu0
    %v83 = vadd.f32 %v60, %v82
    %84 = vdwg.mxu0
    %v85 = vmax.f32 %v83, 0.0
    %v86 = vld [vmem:[#allocation7] sm:$0xff]
    %v87 = vld [vmem:[#allocation7 + $0x8] sm:$0xff]
    %v88 = vld [vmem:[#allocation7 + $0x10] sm:$0xff]
    %v89 = vld [vmem:[#allocation7 + $0x18] sm:$0xff]
    %v90 = vld [vmem:[#allocation7 + $0x20] sm:$0xff]
    %v91 = vld [vmem:[#allocation7 + $0x28] sm:$0xff]
    %v92 = vld [vmem:[#allocation7 + $0x30] sm:$0xff]
    %v93 = vld [vmem:[#allocation7 + $0x38] sm:$0xff]
    %v94 = vld [vmem:[#allocation7 + $0x40] sm:$0xff]
    %v95 = vld [vmem:[#allocation7 + $0x48] sm:$0xff]
    %v96 = vld [vmem:[#allocation7 + $0x50] sm:$0xff]
    %v97 = vld [vmem:[#allocation7 + $0x58] sm:$0xff]
    %v98 = vld [vmem:[#allocation7 + $0x60] sm:$0xff]
    %v99 = vld [vmem:[#allocation7 + $0x68] sm:$0xff]
    %v100 = vld [vmem:[#allocation7 + $0x70] sm:$0xff]
    %v101 = vld [vmem:[#allocation7 + $0x78] sm:$0xff]
    %v102 = vperm.slane %v59, 6
    %103 = vmatpush.msra.mxu0 %v101
    %104 = vmatpush.msra.mxu0 %v100
    %105 = vmatpush.msra.mxu0 %v99
    %106 = vmatpush.msra.mxu0 %v98
    %107 = vmatpush.msra.mxu0 %v97
    %108 = vmatpush.msra.mxu0 %v96
    %109 = vmatpush.msra.mxu0 %v95
    %110 = vmatpush.msra.mxu0 %v94
    %111 = vmatpush.msra.mxu0 %v93
    %112 = vmatpush.msra.mxu0 %v92
    %113 = vmatpush.msra.mxu0 %v91
    %114 = vmatpush.msra.mxu0 %v90
    %115 = vmatpush.msra.mxu0 %v89
    %116 = vmatpush.msra.mxu0 %v88
    %117 = vmatpush.msra.mxu0 %v87
    %118 = vmatpush.msra.mxu0 %v86
    %119 = vmatmul.f32.gmra.mxu0 %v85
    %v120 = vpop.f32.mrf.mxu0
    %v121 = vadd.f32 %v102, %v120
    %122 = vdwg.mxu0
    %v123 = vmax.f32 %v121, 0.0
    %s124 = scalar_lea.vmem [#allocation7], 128
    %v125 = vld [vmem:[%s124] sm:$0xff]
    %v126 = vld [vmem:[%s124 + $0x8] sm:$0xff]
    %v127 = vld [vmem:[%s124 + $0x10] sm:$0xff]
    %v128 = vld [vmem:[%s124 + $0x18] sm:$0xff]
    %v129 = vld [vmem:[%s124 + $0x20] sm:$0xff]
    %v130 = vld [vmem:[%s124 + $0x28] sm:$0xff]
    %v131 = vld [vmem:[%s124 + $0x30] sm:$0xff]
    %v132 = vld [vmem:[%s124 + $0x38] sm:$0xff]
    %v133 = vld [vmem:[%s124 + $0x40] sm:$0xff]
    %v134 = vld [vmem:[%s124 + $0x48] sm:$0xff]
    %v135 = vld [vmem:[%s124 + $0x50] sm:$0xff]
    %v136 = vld [vmem:[%s124 + $0x58] sm:$0xff]
    %v137 = vld [vmem:[%s124 + $0x60] sm:$0xff]
    %v138 = vld [vmem:[%s124 + $0x68] sm:$0xff]
    %v139 = vld [vmem:[%s124 + $0x70] sm:$0xff]
    %v140 = vld [vmem:[%s124 + $0x78] sm:$0xff]
    %v141 = vperm.slane %v59, 7
    %142 = vmatpush.msra.mxu0 %v140
    %143 = vmatpush.msra.mxu0 %v139
    %144 = vmatpush.msra.mxu0 %v138
    %145 = vmatpush.msra.mxu0 %v137
    %146 = vmatpush.msra.mxu0 %v136
    %147 = vmatpush.msra.mxu0 %v135
    %148 = vmatpush.msra.mxu0 %v134
    %149 = vmatpush.msra.mxu0 %v133
    %150 = vmatpush.msra.mxu0 %v132
    %151 = vmatpush.msra.mxu0 %v131
    %152 = vmatpush.msra.mxu0 %v130
    %153 = vmatpush.msra.mxu0 %v129
    %154 = vmatpush.msra.mxu0 %v128
    %155 = vmatpush.msra.mxu0 %v127
    %156 = vmatpush.msra.mxu0 %v126
    %157 = vmatpush.msra.mxu0 %v125
    %158 = vmatmul.f32.gmra.mxu0 %v123
    %v159 = vpop.f32.mrf.mxu0
    %v160 = vadd.f32 %v141, %v159
    %161 = vdwg.mxu0
    %162 = vst [vmem:[#allocation8] sm:$0xff] %v160
    // Predicated region
    $region26: #{tpu_custom_call.1} parent=1 // pred_check
      _
    $region27: #{tpu_custom_call.1} parent=1 // pred_check_branch
      %164 = sbr.rel (0) target = $region29
    $region28: #{tpu_custom_call.1} parent=1 // pred_region
      %166 = vsyncadd [#allocation4], 0
      %s168 = sshll.u32 [#allocation8], 4
      %s169 = int_to_ptr.vmem [resolvable:$true] %s168
      %s170 = sshll.u32 %s3, 4
      %s171 = int_to_ptr.hbm [resolvable:$true] %s170
      %173 = dma.vmem_to_hbm [thread:$0]  %s169, 128, %s171, [#allocation4]
    $region29: #{tpu_custom_call.1} parent=1 // pred_fallthru
      _
    // Predicated region
    $region30: #{tpu_custom_call.1} parent=1 // pred_check
      _
    $region31: #{tpu_custom_call.1} parent=1 // pred_check_branch
      %175 = sbr.rel (0) target = $region33
    $region32: #{tpu_custom_call.1} parent=1 // pred_region
      %177 = dma.done [#allocation4], 128
    $region33: #{tpu_custom_call.1} parent=1 // pred_fallthru
      _
    %178 = vsyncpa [#allocation3], 1
    %179 = vsyncpa [#allocation6], 1
    %180 = vsyncpa [#allocation4], 1

</llo_original>
